<compile_context>
chip_gen: v5e
topology: v5e:2x2
jax: 0.10.0
libtpu: 0.0.40
codegen_flags: <defaults>
</compile_context>

<pallas_src>
import functools

import jax
import jax.numpy as jnp
import numpy as np
from jax.experimental import pallas as pl
from jax.experimental.pallas import tpu as pltpu


def _mha_kernel(params_ref, x_ref, y_ref, z_ref, o_ref, w_ref, *, n_batch):
    # params (SMEM, shape (8,)): [wq, wk, wv, bq, bk, bv, wo, bo]
    # (softmax scale is already folded into wq/bq by the wrapper).
    wq = params_ref[0]
    wk = params_ref[1]
    wv = params_ref[2]
    bq = params_ref[3]
    bk = params_ref[4]
    bv = params_ref[5]
    wo = params_ref[6]
    bo = params_ref[7]

    # Whole-block projections, hoisted out of the batch loop: 3 full-tile FMAs
    # instead of 3*N masked single-lane slices + FMAs.
    q_all = x_ref[...].astype(jnp.float32) * wq + bq      # (L, N)
    k_all = y_ref[...].astype(jnp.float32) * wk + bk      # (S, N)
    v_all = z_ref[...].astype(jnp.float32) * wv + bv      # (S, N)

    # One XLU transpose each (outside the loop) so per-batch K/V rows are cheap
    # sublane slices of already-resident values.
    k_rows = jnp.transpose(k_all)                         # (N, S)
    v_rows = jnp.transpose(v_all)                         # (N, S)

    attn_cols = []
    weight_slabs = []
    # Static, tiny batch unroll (N == 2); see TODO for larger N.
    for n in range(n_batch):
        q_col = q_all[:, n:n + 1]                         # (L, 1) lane slice
        k_row = k_rows[n:n + 1, :]                        # (1, S) sublane slice
        v_row = v_rows[n:n + 1, :]                        # (1, S)

        # Outer-product scores on the VPU (broadcast multiply); no depth-1 MXU
        # contraction / MRF drain.
        scores = q_col * k_row                            # (L, S)

        # Numerically stable softmax over the key axis.
        m = jnp.max(scores, axis=-1, keepdims=True)
        e = jnp.exp(scores - m)
        denom = jnp.sum(e, axis=-1, keepdims=True)
        # EUP approximate reciprocal + one Newton-Raphson refinement step:
        # keeps the divide off the VALU while recovering ~f32 accuracy.
        r = pl.reciprocal(denom, approx=True)
        r = r * (2.0 - denom * r)
        p = e * r                                         # (L, S)

        # Weighted value sum: VPU multiply + XLU lane reduce (no (L,S)@(S,1)).
        attn_cols.append(jnp.sum(p * v_row, axis=-1, keepdims=True))   # (L, 1)
        weight_slabs.append(p)

    # Coalesced writebacks: one full-block store per output, with the output
    # projection applied once on the whole (L, N) block.
    attn = jnp.concatenate(attn_cols, axis=-1)            # (L, N)
    o_ref[...] = (attn * wo + bo).astype(o_ref.dtype)
    w_ref[...] = jnp.stack(weight_slabs, axis=0).astype(w_ref.dtype)   # (N, L, S)


def multihead_attention_pallas(x, y, z, params):
    """x: (L, N, E) query, y/z: (S, N, E) key/value, E == 1, params: (8,)."""
    L, N, E = x.shape
    S = y.shape[0]
    assert E == 1, "module fixes embed_dim=1"

    # Zero-size case (the original test feeds zero-sized tensors): no valid
    # Pallas block exists, so emit empty outputs directly.
    if L == 0 or S == 0 or N == 0:
        return (jnp.zeros((L, N, E), x.dtype), jnp.zeros((N, L, S), x.dtype))

    # Fold the softmax scale (1/sqrt(head_dim), head_dim == E/num_heads == 1)
    # into the query projection so the kernel never multiplies by it.
    scale = 1.0 / float(np.sqrt(E))
    if scale != 1.0:
        scale_vec = jnp.array([scale, 1.0, 1.0, scale, 1.0, 1.0, 1.0, 1.0],
                              params.dtype)
        params = params * scale_vec

    # Free reshapes only (drop the trailing unit embed dim); no HBM transposes.
    x2 = x.reshape(L, N)
    y2 = y.reshape(S, N)
    z2 = z.reshape(S, N)

    kernel = functools.partial(_mha_kernel, n_batch=N)

    out2, w_nls = pl.pallas_call(
        kernel,
        out_shape=(
            jax.ShapeDtypeStruct((L, N), x.dtype),        # attn output (seq, batch)
            jax.ShapeDtypeStruct((N, L, S), x.dtype),     # attn weights
        ),
        # No grid: single invocation, whole arrays as blocks.
        in_specs=[
            pl.BlockSpec(memory_space=pltpu.MemorySpace.SMEM),   # params (8,)
            pl.BlockSpec(memory_space=pltpu.MemorySpace.VMEM),   # query (L, N)
            pl.BlockSpec(memory_space=pltpu.MemorySpace.VMEM),   # key   (S, N)
            pl.BlockSpec(memory_space=pltpu.MemorySpace.VMEM),   # value (S, N)
        ],
        out_specs=(
            pl.BlockSpec(memory_space=pltpu.MemorySpace.VMEM),
            pl.BlockSpec(memory_space=pltpu.MemorySpace.VMEM),
        ),
    )(params, x2, y2, z2)

    attn_output = out2.reshape(L, N, E)   # free reshape back to (L, N, E)
    return attn_output, w_nls


def _reference_mha(x, y, z, params):
    """Pure-JAX reference of nn.MultiheadAttention(1, 1) forward."""
    wq, wk, wv, bq, bk, bv, wo, bo = [params[i] for i in range(8)]
    qn = jnp.transpose(x * wq + bq, (1, 0, 2))  # (N, L, 1)
    kn = jnp.transpose(y * wk + bk, (1, 0, 2))  # (N, S, 1)
    vn = jnp.transpose(z * wv + bv, (1, 0, 2))  # (N, S, 1)
    scores = jnp.einsum("nle,nse->nls", qn, kn)  # scale == 1 for head_dim 1
    p = jax.nn.softmax(scores, axis=-1)
    out = jnp.einsum("nls,nse->nle", p, vn) * wo + bo
    return jnp.transpose(out, (1, 0, 2)), p


if __name__ == "__main__":
    L, S, N, E = 8, 8, 2, 1

    key = jax.random.PRNGKey(0)
    kx, ky, kz, kw, kb, kow, kob = jax.random.split(key, 7)

    # Inputs: (seq, batch, embed) as PyTorch batch_first=False expects.
    x = jax.random.normal(kx, (L, N, E), dtype=jnp.float32)
    y = jax.random.normal(ky, (S, N, E), dtype=jnp.float32)
    z = jax.random.normal(kz, (S, N, E), dtype=jnp.float32)

    # Deterministic synthetic parameters (shapes from nn.MultiheadAttention):
    #   in_proj_weight: (3*E, E) = (3, 1), in_proj_bias: (3,)
    #   out_proj.weight: (1, 1),           out_proj.bias: (1,)
    in_proj_w = jax.random.normal(kw, (3, 1), dtype=jnp.float32) * 0.7
    in_proj_b = jax.random.normal(kb, (3,), dtype=jnp.float32) * 0.1
    out_proj_w = jax.random.normal(kow, (1, 1), dtype=jnp.float32) * 0.7
    out_proj_b = jax.random.normal(kob, (1,), dtype=jnp.float32) * 0.1

    # Pack scalar params as a 1-D SMEM array: [wq, wk, wv, bq, bk, bv, wo, bo].
    params = jnp.concatenate(
        [in_proj_w[:, 0], in_proj_b, out_proj_w[0], out_proj_b]
    ).astype(jnp.float32)                                   # shape (8,)

    attn_out, attn_w = jax.jit(multihead_attention_pallas)(x, y, z, params)
    attn_out = jax.block_until_ready(attn_out)
    attn_w = jax.block_until_ready(attn_w)

    ref_out, ref_w = _reference_mha(x, y, z, params)
    np.testing.assert_allclose(np.asarray(attn_out), np.asarray(ref_out),
                               rtol=1e-4, atol=1e-5)
    np.testing.assert_allclose(np.asarray(attn_w), np.asarray(ref_w),
                               rtol=1e-4, atol=1e-5)

    assert attn_out.shape == (L, N, E)
    assert attn_w.shape == (N, L, S)

    # Zero-size path (the case the original module is named after).
    zo, zw = multihead_attention_pallas(
        jnp.zeros((0, N, E), jnp.float32),
        jnp.zeros((S, N, E), jnp.float32),
        jnp.zeros((S, N, E), jnp.float32), params)
    assert zo.shape == (0, N, E) and zw.shape == (N, 0, S)

    print("KERNEL_OK")
</pallas_src>

<mosaic_0001>
module attributes {stable_mosaic.version = 11 : i64} {
  func.func @_mha_kernel(%arg0: memref<8xf32, #tpu.memory_space<smem>>, %arg1: memref<8x2xf32, #tpu.memory_space<vmem>>, %arg2: memref<8x2xf32, #tpu.memory_space<vmem>>, %arg3: memref<8x2xf32, #tpu.memory_space<vmem>>, %arg4: memref<8x2xf32, #tpu.memory_space<vmem>>, %arg5: memref<2x8x8xf32, #tpu.memory_space<vmem>>) attributes {dimension_semantics = [], scalar_prefetch = 0 : i64, scratch_operands = 0 : i64, tpu.core_type = #tpu.core_type<tc>} {
    %c0 = arith.constant 0 : index
    %0 = memref.load %arg0[%c0] : memref<8xf32, #tpu.memory_space<smem>>
    %c1 = arith.constant 1 : index
    %1 = memref.load %arg0[%c1] : memref<8xf32, #tpu.memory_space<smem>>
    %c2 = arith.constant 2 : index
    %2 = memref.load %arg0[%c2] : memref<8xf32, #tpu.memory_space<smem>>
    %c3 = arith.constant 3 : index
    %3 = memref.load %arg0[%c3] : memref<8xf32, #tpu.memory_space<smem>>
    %c4 = arith.constant 4 : index
    %4 = memref.load %arg0[%c4] : memref<8xf32, #tpu.memory_space<smem>>
    %c5 = arith.constant 5 : index
    %5 = memref.load %arg0[%c5] : memref<8xf32, #tpu.memory_space<smem>>
    %c6 = arith.constant 6 : index
    %6 = memref.load %arg0[%c6] : memref<8xf32, #tpu.memory_space<smem>>
    %c7 = arith.constant 7 : index
    %7 = memref.load %arg0[%c7] : memref<8xf32, #tpu.memory_space<smem>>
    %c0_0 = arith.constant 0 : index
    %c0_1 = arith.constant 0 : index
    %8 = vector.load %arg1[%c0_0, %c0_1] : memref<8x2xf32, #tpu.memory_space<vmem>>, vector<8x2xf32>
    %9 = vector.broadcast %0 : f32 to vector<8x2xf32>
    %10 = arith.mulf %8, %9 : vector<8x2xf32>
    %11 = vector.broadcast %3 : f32 to vector<8x2xf32>
    %12 = arith.addf %10, %11 : vector<8x2xf32>
    %c0_2 = arith.constant 0 : index
    %c0_3 = arith.constant 0 : index
    %13 = vector.load %arg2[%c0_2, %c0_3] : memref<8x2xf32, #tpu.memory_space<vmem>>, vector<8x2xf32>
    %14 = vector.broadcast %1 : f32 to vector<8x2xf32>
    %15 = arith.mulf %13, %14 : vector<8x2xf32>
    %16 = vector.broadcast %4 : f32 to vector<8x2xf32>
    %17 = arith.addf %15, %16 : vector<8x2xf32>
    %c0_4 = arith.constant 0 : index
    %c0_5 = arith.constant 0 : index
    %18 = vector.load %arg3[%c0_4, %c0_5] : memref<8x2xf32, #tpu.memory_space<vmem>>, vector<8x2xf32>
    %19 = vector.broadcast %2 : f32 to vector<8x2xf32>
    %20 = arith.mulf %18, %19 : vector<8x2xf32>
    %21 = vector.broadcast %5 : f32 to vector<8x2xf32>
    %22 = arith.addf %20, %21 : vector<8x2xf32>
    %23 = tpu.transpose %17, [1, 0] : vector<8x2xf32> -> vector<2x8xf32>
    %24 = tpu.transpose %22, [1, 0] : vector<8x2xf32> -> vector<2x8xf32>
    %25 = vector.extract_strided_slice %12 {offsets = [0, 0], sizes = [8, 1], strides = [1, 1]} : vector<8x2xf32> to vector<8x1xf32>
    %26 = vector.extract_strided_slice %23 {offsets = [0, 0], sizes = [1, 8], strides = [1, 1]} : vector<2x8xf32> to vector<1x8xf32>
    %27 = vector.extract_strided_slice %24 {offsets = [0, 0], sizes = [1, 8], strides = [1, 1]} : vector<2x8xf32> to vector<1x8xf32>
    %28 = vector.broadcast %25 : vector<8x1xf32> to vector<8x8xf32>
    %29 = vector.broadcast %26 : vector<1x8xf32> to vector<8x8xf32>
    %30 = arith.mulf %28, %29 : vector<8x8xf32>
    %cst = arith.constant dense<0xFF800000> : vector<8xf32>
    %31 = vector.multi_reduction <maximumf>, %30, %cst [1] : vector<8x8xf32> to vector<8xf32>
    %32 = vector.shape_cast %31 : vector<8xf32> to vector<8x1xf32>
    %33 = vector.broadcast %32 : vector<8x1xf32> to vector<8x8xf32>
    %34 = arith.subf %30, %33 : vector<8x8xf32>
    %35 = math.exp %34 : vector<8x8xf32>
    %cst_6 = arith.constant dense<0.000000e+00> : vector<8xf32>
    %36 = vector.multi_reduction <add>, %35, %cst_6 [1] : vector<8x8xf32> to vector<8xf32>
    %37 = vector.shape_cast %36 : vector<8xf32> to vector<8x1xf32>
    %38 = tpu.reciprocal %37 {approx = true} : vector<8x1xf32> -> vector<8x1xf32>
    %39 = arith.mulf %37, %38 : vector<8x1xf32>
    %cst_7 = arith.constant 2.000000e+00 : f32
    %40 = vector.broadcast %cst_7 : f32 to vector<8x1xf32>
    %41 = arith.subf %40, %39 : vector<8x1xf32>
    %42 = arith.mulf %38, %41 : vector<8x1xf32>
    %43 = vector.broadcast %42 : vector<8x1xf32> to vector<8x8xf32>
    %44 = arith.mulf %35, %43 : vector<8x8xf32>
    %45 = vector.broadcast %27 : vector<1x8xf32> to vector<8x8xf32>
    %46 = arith.mulf %44, %45 : vector<8x8xf32>
    %cst_8 = arith.constant dense<0.000000e+00> : vector<8xf32>
    %47 = vector.multi_reduction <add>, %46, %cst_8 [1] : vector<8x8xf32> to vector<8xf32>
    %48 = vector.shape_cast %47 : vector<8xf32> to vector<8x1xf32>
    %49 = vector.extract_strided_slice %12 {offsets = [0, 1], sizes = [8, 1], strides = [1, 1]} : vector<8x2xf32> to vector<8x1xf32>
    %50 = vector.extract_strided_slice %23 {offsets = [1, 0], sizes = [1, 8], strides = [1, 1]} : vector<2x8xf32> to vector<1x8xf32>
    %51 = vector.extract_strided_slice %24 {offsets = [1, 0], sizes = [1, 8], strides = [1, 1]} : vector<2x8xf32> to vector<1x8xf32>
    %52 = vector.broadcast %49 : vector<8x1xf32> to vector<8x8xf32>
    %53 = vector.broadcast %50 : vector<1x8xf32> to vector<8x8xf32>
    %54 = arith.mulf %52, %53 : vector<8x8xf32>
    %cst_9 = arith.constant dense<0xFF800000> : vector<8xf32>
    %55 = vector.multi_reduction <maximumf>, %54, %cst_9 [1] : vector<8x8xf32> to vector<8xf32>
    %56 = vector.shape_cast %55 : vector<8xf32> to vector<8x1xf32>
    %57 = vector.broadcast %56 : vector<8x1xf32> to vector<8x8xf32>
    %58 = arith.subf %54, %57 : vector<8x8xf32>
    %59 = math.exp %58 : vector<8x8xf32>
    %cst_10 = arith.constant dense<0.000000e+00> : vector<8xf32>
    %60 = vector.multi_reduction <add>, %59, %cst_10 [1] : vector<8x8xf32> to vector<8xf32>
    %61 = vector.shape_cast %60 : vector<8xf32> to vector<8x1xf32>
    %62 = tpu.reciprocal %61 {approx = true} : vector<8x1xf32> -> vector<8x1xf32>
    %63 = arith.mulf %61, %62 : vector<8x1xf32>
    %cst_11 = arith.constant 2.000000e+00 : f32
    %64 = vector.broadcast %cst_11 : f32 to vector<8x1xf32>
    %65 = arith.subf %64, %63 : vector<8x1xf32>
    %66 = arith.mulf %62, %65 : vector<8x1xf32>
    %67 = vector.broadcast %66 : vector<8x1xf32> to vector<8x8xf32>
    %68 = arith.mulf %59, %67 : vector<8x8xf32>
    %69 = vector.broadcast %51 : vector<1x8xf32> to vector<8x8xf32>
    %70 = arith.mulf %68, %69 : vector<8x8xf32>
    %cst_12 = arith.constant dense<0.000000e+00> : vector<8xf32>
    %71 = vector.multi_reduction <add>, %70, %cst_12 [1] : vector<8x8xf32> to vector<8xf32>
    %72 = vector.shape_cast %71 : vector<8xf32> to vector<8x1xf32>
    %73 = tpu.concatenate %48, %72 in 1 : vector<8x1xf32>, vector<8x1xf32> -> vector<8x2xf32>
    %74 = vector.broadcast %6 : f32 to vector<8x2xf32>
    %75 = arith.mulf %73, %74 : vector<8x2xf32>
    %76 = vector.broadcast %7 : f32 to vector<8x2xf32>
    %77 = arith.addf %75, %76 : vector<8x2xf32>
    %c0_13 = arith.constant 0 : index
    %c0_14 = arith.constant 0 : index
    %78 = vector.load %arg4[%c0_13, %c0_14] : memref<8x2xf32, #tpu.memory_space<vmem>>, vector<8x2xf32>
    tpu.vector_store %arg4[%c0_13, %c0_14], %77 {strides = array<i32>} : memref<8x2xf32, #tpu.memory_space<vmem>>, vector<8x2xf32>,
    %79 = vector.shape_cast %44 : vector<8x8xf32> to vector<1x8x8xf32>
    %80 = vector.shape_cast %68 : vector<8x8xf32> to vector<1x8x8xf32>
    %81 = tpu.concatenate %79, %80 in 0 : vector<1x8x8xf32>, vector<1x8x8xf32> -> vector<2x8x8xf32>
    %c0_15 = arith.constant 0 : index
    %c0_16 = arith.constant 0 : index
    %c0_17 = arith.constant 0 : index
    %82 = vector.load %arg5[%c0_15, %c0_16, %c0_17] : memref<2x8x8xf32, #tpu.memory_space<vmem>>, vector<2x8x8xf32>
    tpu.vector_store %arg5[%c0_15, %c0_16, %c0_17], %81 {strides = array<i32>} : memref<2x8x8xf32, #tpu.memory_space<vmem>>, vector<2x8x8xf32>,
    return
  }
}

</mosaic_0001>

<llo_original>
// kernel: multihead_attention_pallas.1
$region0: #{multihead_attention_pallas.1}
  #allocation0 [shape = 'u32[]', space=smem, size = 0x4, offset = 0x4, fixed_abs, tag = 'smem constant byte address 0x4 - core index']
  #allocation1 [shape = 'u32[72,128]{1,0:T(1,128)}', space=vmem, size = 0x9000, scoped, tag = 'internal scratch']
  %s0 = inlined_call_operand.vmem [shape: f32[8], index: 0, kind: input, shape index: {}]
  %s1 = inlined_call_operand.vmem [shape: f32[8,2], index: 1, kind: input, shape index: {}]
  %s2 = inlined_call_operand.vmem [shape: f32[8,2], index: 2, kind: input, shape index: {}]
  %s3 = inlined_call_operand.vmem [shape: f32[8,2], index: 3, kind: input, shape index: {}]
  %s4 = inlined_call_operand.vmem [shape: f32[8,2], index: 4, kind: output, shape index: {0}]
  %s5 = inlined_call_operand.hbm [shape: f32[2,8,8], index: 5, kind: output, shape index: {1}]
  %6 = xla_tuple %s4, %s5
  %s7 = sld [smem:[#allocation0]]
  $region38: #{multihead_attention_pallas.1} parent=0
    _
  %s9 = ssub.s32 1, %s7
  %s10 = scalar_select 0, %s9, %s7
  $region1: #{multihead_attention_pallas.1} parent=0
    #allocation2 [shape = 'u8[512]{0}', space=smem, size = 0x200, scoped, tag = 'input window, operand 0, single buffered']
    #allocation3 [shape = 's32[1]{0}', space=sflag, size = 0x4, scoped, tag = 'scoped memory for multihead_attention_pallas.1']
    #allocation4 [shape = 's32[1]{0}', space=sflag, size = 0x4, scoped, tag = 'scoped memory for multihead_attention_pallas.1']
    #allocation5 [shape = 'u8[8192]{0}', space=vmem, size = 0x2000, scoped, tag = 'output window, operand 1, single buffered']
    %11 = vsyncpa [#allocation4], 0
    %12 = vsyncpa [#allocation3], 0
    // Predicated region
    $region2: #{multihead_attention_pallas.1} parent=1 // pred_check
      _
    $region3: #{multihead_attention_pallas.1} parent=1 // pred_check_branch
      %14 = sbr.rel (0) target = $region5
    $region4: #{multihead_attention_pallas.1} parent=1 // pred_region
      %16 = vsyncadd [#allocation4], 0
      %s18 = sshll.u32 %s0, 4
      %s19 = int_to_ptr.vmem [resolvable:$true] %s18
      %21 = dma.vmem_to_smem %s19, 16, [#allocation2], [#allocation4]
    $region5: #{multihead_attention_pallas.1} parent=1 // pred_fallthru
      _
    // Predicated region
    $region6: #{multihead_attention_pallas.1} parent=1 // pred_check
      _
    $region7: #{multihead_attention_pallas.1} parent=1 // pred_check_branch
      %23 = sbr.rel (0) target = $region9
    $region8: #{multihead_attention_pallas.1} parent=1 // pred_region
      _
    $region9: #{multihead_attention_pallas.1} parent=1 // pred_fallthru
      _
    // Predicated region
    $region10: #{multihead_attention_pallas.1} parent=1 // pred_check
      _
    $region11: #{multihead_attention_pallas.1} parent=1 // pred_check_branch
      %25 = sbr.rel (0) target = $region13
    $region12: #{multihead_attention_pallas.1} parent=1 // pred_region
      _
    $region13: #{multihead_attention_pallas.1} parent=1 // pred_fallthru
      _
    // Predicated region
    $region14: #{multihead_attention_pallas.1} parent=1 // pred_check
      _
    $region15: #{multihead_attention_pallas.1} parent=1 // pred_check_branch
      %27 = sbr.rel (0) target = $region17
    $region16: #{multihead_attention_pallas.1} parent=1 // pred_region
      _
    $region17: #{multihead_attention_pallas.1} parent=1 // pred_fallthru
      _
    // Predicated region
    $region18: #{multihead_attention_pallas.1} parent=1 // pred_check
      _
    $region19: #{multihead_attention_pallas.1} parent=1 // pred_check_branch
      %29 = sbr.rel (0) target = $region21
    $region20: #{multihead_attention_pallas.1} parent=1 // pred_region
      %31 = dma.done [#allocation4], 16
    $region21: #{multihead_attention_pallas.1} parent=1 // pred_fallthru
      _
    %32 = sfence
    %s33 = sld [smem:[#allocation2]]
    %s34 = sld [smem:[#allocation2 + $0x1]]
    %s35 = sld [smem:[#allocation2 + $0x2]]
    %s36 = sld [smem:[#allocation2 + $0x3]]
    %s37 = sld [smem:[#allocation2 + $0x4]]
    %s38 = sld [smem:[#allocation2 + $0x5]]
    %s39 = sld [smem:[#allocation2 + $0x6]]
    %s40 = sld [smem:[#allocation2 + $0x7]]
    %v41 = vld [vmem:[%s1] sm:$0xff]
    %v42 = vstv %s33
    %v43 = vmul.f32 %v41, %v42
    %v44 = vstv %s36
    %v45 = vadd.f32 %v43, %v44
    %v46 = vld [vmem:[%s2] sm:$0xff]
    %v47 = vstv %s34
    %v48 = vmul.f32 %v46, %v47
    %v49 = vstv %s37
    %v50 = vadd.f32 %v48, %v49
    %v51 = vld [vmem:[%s3] sm:$0xff]
    %v52 = vstv %s35
    %v53 = vmul.f32 %v51, %v52
    %v54 = vstv %s38
    %v55 = vadd.f32 %v53, %v54
    %56 = vxpose.xlu0.b32.start [1/16] %v50, 128
    %57 = vxpose.xlu0.b32.cont [2/16] 0.0, 128
    %58 = vxpose.xlu0.b32.cont [3/16] 0.0, 128
    %59 = vxpose.xlu0.b32.cont [4/16] 0.0, 128
    %60 = vxpose.xlu0.b32.cont [5/16] 0.0, 128
    %61 = vxpose.xlu0.b32.cont [6/16] 0.0, 128
    %62 = vxpose.xlu0.b32.cont [7/16] 0.0, 128
    %63 = vxpose.xlu0.b32.cont [8/16] 0.0, 128
    %64 = vxpose.xlu0.b32.cont [9/16] 0.0, 128
    %65 = vxpose.xlu0.b32.cont [10/16] 0.0, 128
    %66 = vxpose.xlu0.b32.cont [11/16] 0.0, 128
    %67 = vxpose.xlu0.b32.cont [12/16] 0.0, 128
    %68 = vxpose.xlu0.b32.cont [13/16] 0.0, 128
    %69 = vxpose.xlu0.b32.cont [14/16] 0.0, 128
    %70 = vxpose.xlu0.b32.cont [15/16] 0.0, 128
    %71 = vxpose.xlu0.b32.end [16/16] 0.0, 128
    %v72 = vpop.trf.xlu0
    %v73 = vpop.trf.xlu0
    %v74 = vpop.trf.xlu0
    %v75 = vpop.trf.xlu0
    %v76 = vpop.trf.xlu0
    %v77 = vpop.trf.xlu0
    %v78 = vpop.trf.xlu0
    %v79 = vpop.trf.xlu0
    %v80 = vpop.trf.xlu0
    %v81 = vpop.trf.xlu0
    %v82 = vpop.trf.xlu0
    %v83 = vpop.trf.xlu0
    %v84 = vpop.trf.xlu0
    %v85 = vpop.trf.xlu0
    %v86 = vpop.trf.xlu0
    %v87 = vpop.trf.xlu0
    %88 = vxpose.xlu0.b32.start [1/16] %v55, 128
    %89 = vxpose.xlu0.b32.cont [2/16] 0.0, 128
    %90 = vxpose.xlu0.b32.cont [3/16] 0.0, 128
    %91 = vxpose.xlu0.b32.cont [4/16] 0.0, 128
    %92 = vxpose.xlu0.b32.cont [5/16] 0.0, 128
    %93 = vxpose.xlu0.b32.cont [6/16] 0.0, 128
    %94 = vxpose.xlu0.b32.cont [7/16] 0.0, 128
    %95 = vxpose.xlu0.b32.cont [8/16] 0.0, 128
    %96 = vxpose.xlu0.b32.cont [9/16] 0.0, 128
    %97 = vxpose.xlu0.b32.cont [10/16] 0.0, 128
    %98 = vxpose.xlu0.b32.cont [11/16] 0.0, 128
    %99 = vxpose.xlu0.b32.cont [12/16] 0.0, 128
    %100 = vxpose.xlu0.b32.cont [13/16] 0.0, 128
    %101 = vxpose.xlu0.b32.cont [14/16] 0.0, 128
    %102 = vxpose.xlu0.b32.cont [15/16] 0.0, 128
    %103 = vxpose.xlu0.b32.end [16/16] 0.0, 128
    %v104 = vpop.trf.xlu0
    %v105 = vpop.trf.xlu0
    %v106 = vpop.trf.xlu0
    %v107 = vpop.trf.xlu0
    %v108 = vpop.trf.xlu0
    %v109 = vpop.trf.xlu0
    %v110 = vpop.trf.xlu0
    %v111 = vpop.trf.xlu0
    %v112 = vpop.trf.xlu0
    %v113 = vpop.trf.xlu0
    %v114 = vpop.trf.xlu0
    %v115 = vpop.trf.xlu0
    %v116 = vpop.trf.xlu0
    %v117 = vpop.trf.xlu0
    %v118 = vpop.trf.xlu0
    %v119 = vpop.trf.xlu0
    %121 = vset.pattern.permute.xlu0 0
    %122 = vperm.xlu0 %121, %v45
    %v123 = vpop.permute.xlu0 %122
    %v125 = vperm.slane %v72, 0
    %v126 = vmul.f32 %v123, %v125
    %vm127 = vcmask 64512
    %v128 = vsel %vm127, %v126, -inf
    %129 = vmax.xlane.f32.xlu0 %v128
    %v130 = vpop.xlane.xlu0 %129
    %v131 = vsub.f32 %v126, %v130
    %v132 = vmul.f32 %v131, 1.442695
    %v133 = vpow.pop %v132
    %v134 = vsel %vm127, %v133, 0.0
    %135 = vadd.xlane.f32.xlu0 %v134
    %v136 = vpop.xlane.xlu0 %135
    %v137 = vrcp.pop %v136
    %v138 = vmul.f32 %v136, %v137
    %v139 = vsub.f32 2.0, %v138
    %v140 = vmul.f32 %v137, %v139
    %v141 = vmul.f32 %v133, %v140
    %v142 = vperm.slane %v104, 0
    %v143 = vmul.f32 %v141, %v142
    %v144 = vsel %vm127, %v143, 0.0
    %145 = vadd.xlane.f32.xlu0 %v144
    %v146 = vpop.xlane.xlu0 %145
    %147 = vset.pattern.permute.xlu0 1
    %148 = vperm.xlu0 %147, %v45
    %v149 = vpop.permute.xlu0 %148
    %v151 = vperm.slane %v72, 1
    %v152 = vmul.f32 %v149, %v151
    %v153 = vsel %vm127, %v152, -inf
    %154 = vmax.xlane.f32.xlu0 %v153
    %v155 = vpop.xlane.xlu0 %154
    %v156 = vsub.f32 %v152, %v155
    %v157 = vmul.f32 %v156, 1.442695
    %v158 = vpow.pop %v157
    %v159 = vsel %vm127, %v158, 0.0
    %160 = vadd.xlane.f32.xlu0 %v159
    %v161 = vpop.xlane.xlu0 %160
    %v162 = vrcp.pop %v161
    %v163 = vmul.f32 %v161, %v162
    %v164 = vsub.f32 2.0, %v163
    %v165 = vmul.f32 %v162, %v164
    %v166 = vmul.f32 %v158, %v165
    %v167 = vperm.slane %v104, 1
    %v168 = vmul.f32 %v166, %v167
    %v169 = vsel %vm127, %v168, 0.0
    %170 = vadd.xlane.f32.xlu0 %v169
    %v171 = vpop.xlane.xlu0 %170
    %vm172 = vcmask 7168
    %v173 = vsel %vm172, %v146, %v171
    %v174 = vstv %s39
    %v175 = vmul.f32 %v173, %v174
    %v176 = vstv %s40
    %v177 = vadd.f32 %v175, %v176
    %vm178 = vcmask 15360
    %179 = vst.msk [vmem:[%s4] sm:$0xff] %vm178, %v177
    %180 = vst.msk [vmem:[#allocation5] sm:$0xff] %vm127, %v141
    %181 = vst.msk [vmem:[#allocation5 + $0x8] sm:$0xff] %vm127, %v166
    // Predicated region
    $region22: #{multihead_attention_pallas.1} parent=1 // pred_check
      _
    $region23: #{multihead_attention_pallas.1} parent=1 // pred_check_branch
      %183 = sbr.rel (0) target = $region25
    $region24: #{multihead_attention_pallas.1} parent=1 // pred_region
      _
    $region25: #{multihead_attention_pallas.1} parent=1 // pred_fallthru
      _
    // Predicated region
    $region26: #{multihead_attention_pallas.1} parent=1 // pred_check
      _
    $region27: #{multihead_attention_pallas.1} parent=1 // pred_check_branch
      %185 = sbr.rel (0) target = $region29
    $region28: #{multihead_attention_pallas.1} parent=1 // pred_region
      %187 = vsyncadd [#allocation3], 0
      %s188 = sshll.u32 [#allocation5], 4
      %s189 = int_to_ptr.vmem [resolvable:$true] %s188
      %s190 = sshll.u32 %s5, 4
      %s191 = int_to_ptr.hbm [resolvable:$true] %s190
      %196 = dma.vmem_to_hbm [thread:$0]  %s189, 256, %s191, [#allocation3], 128, 128, 8
    $region29: #{multihead_attention_pallas.1} parent=1 // pred_fallthru
      _
    // Predicated region
    $region30: #{multihead_attention_pallas.1} parent=1 // pred_check
      _
    $region31: #{multihead_attention_pallas.1} parent=1 // pred_check_branch
      %198 = sbr.rel (0) target = $region33
    $region32: #{multihead_attention_pallas.1} parent=1 // pred_region
      _
    $region33: #{multihead_attention_pallas.1} parent=1 // pred_fallthru
      _
    // Predicated region
    $region34: #{multihead_attention_pallas.1} parent=1 // pred_check
      _
    $region35: #{multihead_attention_pallas.1} parent=1 // pred_check_branch
      %200 = sbr.rel (0) target = $region37
    $region36: #{multihead_attention_pallas.1} parent=1 // pred_region
      %202 = dma.done [#allocation3], 256
    $region37: #{multihead_attention_pallas.1} parent=1 // pred_fallthru
      _
    %203 = vsyncpa [#allocation3], 1
    %204 = vsyncpa [#allocation4], 1

</llo_original>
